<compile_context>
chip_gen: v5e
topology: v5e:2x2
jax: 0.10.0
libtpu: 0.0.40
codegen_flags: <defaults>
</compile_context>

<pallas_src>
import jax
import jax.numpy as jnp
from jax.experimental import pallas as pl
from jax.experimental.pallas import tpu as pltpu

STATE_SIZE = 71          # from the PyTorch module
ACTION_SIZE = 11         # QWOP env action_space.n (synthetic choice, documented)
HIDDEN_SIZE = 64

PADDED_HIDDEN = 128      # hidden 64 -> 128 lanes (full vregs for bias/ReLU)
PADDED_ACTION = 128      # fc2 output computed 128-wide, sliced to 11 in-kernel

BATCH_TILE = 4096        # rows per grid step (multiple of 8); amortizes step overhead
NO_GRID_MAX = 256        # at/below this batch size: single block, no grid layer
VMEM_LIMIT_BYTES = 32 * 1024 * 1024  # explicit scoped-VMEM bump (v5e default ~16 MiB)


def _round_up(x, m):
    return ((x + m - 1) // m) * m


def qnetwork_kernel(x_ref, w1_ref, b1_ref, w2_ref, b2_ref, out_ref):
    """Fused MLP tile: out = (relu(x @ w1 + b1) @ w2 + b2)[:, :ACTION_SIZE].

    x_ref  : (TB, STATE_SIZE)               f32 or bf16
    w1_ref : (STATE_SIZE, PADDED_HIDDEN)    same dtype as x (cols >= 64 zero)
    b1_ref : (1, PADDED_HIDDEN)             f32
    w2_ref : (PADDED_HIDDEN, PADDED_ACTION) same dtype as x (rows >= 64 zero)
    b2_ref : (1, PADDED_ACTION)             f32
    out_ref: (TB, ACTION_SIZE)              f32
    """
    x = x_ref[...]
    # fc1 + ReLU: MXU matmul with f32 accumulation; bias/ReLU in f32 on full lanes.
    h = jnp.dot(x, w1_ref[...], preferred_element_type=jnp.float32) + b1_ref[...]
    h = jnp.maximum(h, 0.0)
    # fc2 (128-wide in-register), then static slice to the 11 real actions so
    # only 44 B/row ever leave the kernel (no separate XLA slice pass).
    y = (
        jnp.dot(h.astype(w2_ref.dtype), w2_ref[...],
                preferred_element_type=jnp.float32)
        + b2_ref[...]
    )
    out_ref[...] = y[:, :ACTION_SIZE]


def prepare_params(w1, b1, w2, b2, *, dtype=jnp.float32):
    """One-time prep: transpose to (in, out) and zero-pad feature dims to 128.

    Inputs follow PyTorch nn.Linear conventions:
      w1: (HIDDEN_SIZE, STATE_SIZE), b1: (HIDDEN_SIZE,)
      w2: (ACTION_SIZE, HIDDEN_SIZE), b2: (ACTION_SIZE,)
    `dtype` controls the streamed weight/activation dtype (f32 default; bf16
    halves HBM bytes on v6e/v7x, biases and accumulation stay f32).
    """
    w1p = (
        jnp.zeros((STATE_SIZE, PADDED_HIDDEN), dtype)
        .at[:, :HIDDEN_SIZE]
        .set(w1.T.astype(dtype))
    )
    b1p = (
        jnp.zeros((1, PADDED_HIDDEN), jnp.float32)
        .at[:, :HIDDEN_SIZE]
        .set(b1.astype(jnp.float32))
    )
    w2p = (
        jnp.zeros((PADDED_HIDDEN, PADDED_ACTION), dtype)
        .at[:HIDDEN_SIZE, :ACTION_SIZE]
        .set(w2.T.astype(dtype))
    )
    b2p = (
        jnp.zeros((1, PADDED_ACTION), jnp.float32)
        .at[:, :ACTION_SIZE]
        .set(b2.astype(jnp.float32))
    )
    return w1p, b1p, w2p, b2p


def qnetwork_forward(state, params, *, batch_tile=BATCH_TILE):
    """state: (B, STATE_SIZE); params from prepare_params; -> (B, ACTION_SIZE) f32."""
    w1p, b1p, w2p, b2p = params
    B = state.shape[0]
    state = state.astype(w1p.dtype)
    out_shape = jax.ShapeDtypeStruct((B, ACTION_SIZE), jnp.float32)

    if B <= NO_GRID_MAX:
        # Tiny batch: single full-array block resident in VMEM, no grid layer
        # (avoids the ~0.35 us per-step grid overhead at dispatch-bound sizes).
        return pl.pallas_call(qnetwork_kernel, out_shape=out_shape)(
            state, w1p, b1p, w2p, b2p
        )

    # Batch tile: as large as batch_tile, but capped so the grid has >= 2
    # steps -- dimension_semantics=("parallel",) then shards tiles across both
    # TensorCores on v7x (no effect on single-TC v5e/v6e).
    tb = max(8, min(batch_tile, _round_up(pl.cdiv(B, 2), 8)))
    n_steps = pl.cdiv(B, tb)

    itemsize = jnp.dtype(state.dtype).itemsize
    cost = pl.CostEstimate(
        flops=2 * B * (STATE_SIZE * PADDED_HIDDEN + PADDED_HIDDEN * PADDED_ACTION),
        transcendentals=0,
        bytes_accessed=(
            B * (STATE_SIZE * itemsize + ACTION_SIZE * 4)
            + (w1p.size + w2p.size) * itemsize
            + (b1p.size + b2p.size) * 4
        ),
    )

    return pl.pallas_call(
        qnetwork_kernel,
        out_shape=out_shape,
        grid=(n_steps,),
        in_specs=[
            # Activations stream tile-by-tile (auto double-buffered).
            pl.BlockSpec((tb, STATE_SIZE), lambda i: (i, 0)),
            # Weights/biases: constant index_map -> VMEM-resident across all
            # grid steps (no re-DMA).
            pl.BlockSpec((STATE_SIZE, PADDED_HIDDEN), lambda i: (0, 0)),
            pl.BlockSpec((1, PADDED_HIDDEN), lambda i: (0, 0)),
            pl.BlockSpec((PADDED_HIDDEN, PADDED_ACTION), lambda i: (0, 0)),
            pl.BlockSpec((1, PADDED_ACTION), lambda i: (0, 0)),
        ],
        out_specs=pl.BlockSpec((tb, ACTION_SIZE), lambda i: (i, 0)),
        compiler_params=pltpu.CompilerParams(
            dimension_semantics=("parallel",),
            vmem_limit_bytes=VMEM_LIMIT_BYTES,
        ),
        cost_estimate=cost,
    )(state, w1p, b1p, w2p, b2p)


def init_params(key):
    """Deterministic init matching nn.Linear shapes (uniform like PyTorch default)."""
    k1, k2, k3, k4 = jax.random.split(key, 4)
    bound1 = 1.0 / (STATE_SIZE ** 0.5)
    bound2 = 1.0 / (HIDDEN_SIZE ** 0.5)
    w1 = jax.random.uniform(k1, (HIDDEN_SIZE, STATE_SIZE), jnp.float32, -bound1, bound1)
    b1 = jax.random.uniform(k2, (HIDDEN_SIZE,), jnp.float32, -bound1, bound1)
    w2 = jax.random.uniform(k3, (ACTION_SIZE, HIDDEN_SIZE), jnp.float32, -bound2, bound2)
    b2 = jax.random.uniform(k4, (ACTION_SIZE,), jnp.float32, -bound2, bound2)
    return w1, b1, w2, b2


def _reference(state, w1, b1, w2, b2):
    return jnp.maximum(state @ w1.T + b1, 0.0) @ w2.T + b2


if __name__ == "__main__":
    key = jax.random.PRNGKey(0)
    k_params, k_small, k_mid = jax.random.split(key, 3)

    w1, b1, w2, b2 = init_params(k_params)
    params = prepare_params(w1, b1, w2, b2)   # one-time prep (hoisted out of forward)

    # --- small batch: no-grid path ---
    batch = 2
    state = jax.random.normal(k_small, (batch, STATE_SIZE), jnp.float32)
    out = jax.block_until_ready(qnetwork_forward(state, params))
    ref = _reference(state, w1, b1, w2, b2)
    assert out.shape == (batch, ACTION_SIZE)
    assert jnp.allclose(out, ref, atol=1e-4, rtol=1e-4)

    # --- mid batch: 2-step "parallel" grid with a partial last tile ---
    mid_batch = 777
    state_mid = jax.random.normal(k_mid, (mid_batch, STATE_SIZE), jnp.float32)
    ref_mid = _reference(state_mid, w1, b1, w2, b2)
    out_mid = jax.block_until_ready(qnetwork_forward(state_mid, params))
    assert out_mid.shape == (mid_batch, ACTION_SIZE)
    assert jnp.allclose(out_mid, ref_mid, atol=1e-4, rtol=1e-4)

    # --- same batch, small explicit tile: multi-step pipelined grid path ---
    out_mid_tiled = jax.block_until_ready(
        qnetwork_forward(state_mid, params, batch_tile=128)
    )
    assert out_mid_tiled.shape == (mid_batch, ACTION_SIZE)
    assert jnp.allclose(out_mid_tiled, ref_mid, atol=1e-4, rtol=1e-4)

    # --- optional bf16 streaming mode (looser tolerance vs. f32 reference) ---
    params_bf16 = prepare_params(w1, b1, w2, b2, dtype=jnp.bfloat16)
    out_bf16 = jax.block_until_ready(qnetwork_forward(state_mid, params_bf16))
    assert out_bf16.shape == (mid_batch, ACTION_SIZE)
    assert out_bf16.dtype == jnp.float32
    assert jnp.allclose(out_bf16, ref_mid, atol=5e-2, rtol=5e-2)

    print("KERNEL_OK")
</pallas_src>

<mosaic_0001>
module attributes {stable_mosaic.version = 11 : i64} {
  func.func @qnetwork_kernel(%arg0: memref<2x71xf32, #tpu.memory_space<vmem>>, %arg1: memref<71x128xf32, #tpu.memory_space<vmem>>, %arg2: memref<1x128xf32, #tpu.memory_space<vmem>>, %arg3: memref<128x128xf32, #tpu.memory_space<vmem>>, %arg4: memref<1x128xf32, #tpu.memory_space<vmem>>, %arg5: memref<2x11xf32, #tpu.memory_space<vmem>>) attributes {dimension_semantics = [], scalar_prefetch = 0 : i64, scratch_operands = 0 : i64, tpu.core_type = #tpu.core_type<tc>} {
    %c0 = arith.constant 0 : index
    %c0_0 = arith.constant 0 : index
    %0 = vector.load %arg0[%c0, %c0_0] : memref<2x71xf32, #tpu.memory_space<vmem>>, vector<2x71xf32>
    %c0_1 = arith.constant 0 : index
    %c0_2 = arith.constant 0 : index
    %1 = vector.load %arg1[%c0_1, %c0_2] : memref<71x128xf32, #tpu.memory_space<vmem>>, vector<71x128xf32>
    %cst = arith.constant dense<0.000000e+00> : vector<2x128xf32>
    %2 = tpu.matmul %0, %1, %cst {dimension_numbers = #tpu.dot_dimension_numbers<[1], [0], [0], [1], [0, 0, 1, 1], [], []>} : vector<2x71xf32>, vector<71x128xf32>, vector<2x128xf32> -> vector<2x128xf32>
    %c0_3 = arith.constant 0 : index
    %c0_4 = arith.constant 0 : index
    %3 = vector.load %arg2[%c0_3, %c0_4] : memref<1x128xf32, #tpu.memory_space<vmem>>, vector<1x128xf32>
    %4 = vector.broadcast %3 : vector<1x128xf32> to vector<2x128xf32>
    %5 = arith.addf %2, %4 : vector<2x128xf32>
    %cst_5 = arith.constant 0.000000e+00 : f32
    %6 = vector.broadcast %cst_5 : f32 to vector<2x128xf32>
    %7 = arith.maximumf %5, %6 : vector<2x128xf32>
    %c0_6 = arith.constant 0 : index
    %c0_7 = arith.constant 0 : index
    %8 = vector.load %arg3[%c0_6, %c0_7] : memref<128x128xf32, #tpu.memory_space<vmem>>, vector<128x128xf32>
    %cst_8 = arith.constant dense<0.000000e+00> : vector<2x128xf32>
    %9 = tpu.matmul %7, %8, %cst_8 {dimension_numbers = #tpu.dot_dimension_numbers<[1], [0], [0], [1], [0, 0, 1, 1], [], []>} : vector<2x128xf32>, vector<128x128xf32>, vector<2x128xf32> -> vector<2x128xf32>
    %c0_9 = arith.constant 0 : index
    %c0_10 = arith.constant 0 : index
    %10 = vector.load %arg4[%c0_9, %c0_10] : memref<1x128xf32, #tpu.memory_space<vmem>>, vector<1x128xf32>
    %11 = vector.broadcast %10 : vector<1x128xf32> to vector<2x128xf32>
    %12 = arith.addf %9, %11 : vector<2x128xf32>
    %13 = vector.extract_strided_slice %12 {offsets = [0, 0], sizes = [2, 11], strides = [1, 1]} : vector<2x128xf32> to vector<2x11xf32>
    %c0_11 = arith.constant 0 : index
    %c0_12 = arith.constant 0 : index
    %14 = vector.load %arg5[%c0_11, %c0_12] : memref<2x11xf32, #tpu.memory_space<vmem>>, vector<2x11xf32>
    tpu.vector_store %arg5[%c0_11, %c0_12], %13 {strides = array<i32>} : memref<2x11xf32, #tpu.memory_space<vmem>>, vector<2x11xf32>,
    return
  }
}

</mosaic_0001>

<llo_original>
// kernel: tpu_custom_call.1
$region0: #{tpu_custom_call.1}
  #allocation0 [shape = 'u32[]', space=smem, size = 0x4, offset = 0x4, fixed_abs, tag = 'smem constant byte address 0x4 - core index']
  #allocation1 [shape = 'u32[72,128]{1,0:T(1,128)}', space=vmem, size = 0x9000, scoped, tag = 'internal scratch']
  %s0 = inlined_call_operand.hbm [shape: f32[2,71], index: 0, kind: input, shape index: {}]
  %s1 = inlined_call_operand.hbm [shape: f32[71,128], index: 1, kind: input, shape index: {}]
  %s2 = inlined_call_operand.vmem [shape: f32[1,128], index: 2, kind: input, shape index: {}]
  %s3 = inlined_call_operand.hbm [shape: f32[128,128], index: 3, kind: input, shape index: {}]
  %s4 = inlined_call_operand.vmem [shape: f32[1,128], index: 4, kind: input, shape index: {}]
  %s5 = inlined_call_operand.hbm [shape: f32[2,11], index: 5, kind: output, shape index: {}]
  %s6 = sld [smem:[#allocation0]]
  $region42: #{tpu_custom_call.1} parent=0
    _
  %s8 = ssub.s32 1, %s6
  %s9 = scalar_select 0, %s8, %s6
  $region1: #{tpu_custom_call.1} parent=0
    #allocation2 [shape = 'u8[1024]{0}', space=vmem, size = 0x400, scoped, tag = 'input window, operand 0, single buffered']
    #allocation3 [shape = 's32[1]{0}', space=sflag, size = 0x4, scoped, tag = 'scoped memory for tpu_custom_call.1']
    #allocation4 [shape = 's32[1]{0}', space=sflag, size = 0x4, scoped, tag = 'scoped memory for tpu_custom_call.1']
    #allocation5 [shape = 'u8[36864]{0}', space=vmem, size = 0x9000, scoped, tag = 'input window, operand 1, single buffered']
    #allocation6 [shape = 's32[1]{0}', space=sflag, size = 0x4, scoped, tag = 'scoped memory for tpu_custom_call.1']
    #allocation7 [shape = 'u8[65536]{0}', space=vmem, size = 0x10000, scoped, tag = 'input window, operand 3, single buffered']
    #allocation8 [shape = 'u8[1024]{0}', space=vmem, size = 0x400, scoped, tag = 'output window, operand 0, single buffered']
    %10 = vsyncpa [#allocation3], 0
    %11 = vsyncpa [#allocation6], 0
    %12 = vsyncpa [#allocation4], 0
    // Predicated region
    $region2: #{tpu_custom_call.1} parent=1 // pred_check
      _
    $region3: #{tpu_custom_call.1} parent=1 // pred_check_branch
      %14 = sbr.rel (0) target = $region5
    $region4: #{tpu_custom_call.1} parent=1 // pred_region
      %16 = vsyncadd [#allocation3], 0
      %s18 = sshll.u32 %s0, 4
      %s19 = int_to_ptr.hbm [resolvable:$true] %s18
      %s20 = sshll.u32 [#allocation2], 4
      %s21 = int_to_ptr.vmem [resolvable:$true] %s20
      %23 = dma.hbm_to_vmem [thread:$0]  %s19, 32, %s21, [#allocation3]
    $region5: #{tpu_custom_call.1} parent=1 // pred_fallthru
      _
    // Predicated region
    $region6: #{tpu_custom_call.1} parent=1 // pred_check
      _
    $region7: #{tpu_custom_call.1} parent=1 // pred_check_branch
      %25 = sbr.rel (0) target = $region9
    $region8: #{tpu_custom_call.1} parent=1 // pred_region
      %27 = vsyncadd [#allocation6], 0
      %s28 = sshll.u32 %s1, 4
      %s29 = int_to_ptr.hbm [resolvable:$true] %s28
      %s30 = sshll.u32 [#allocation5], 4
      %s31 = int_to_ptr.vmem [resolvable:$true] %s30
      %36 = dma.hbm_to_vmem [thread:$0]  %s29, 1152, %s31, [#allocation6], 128, 128, 8
    $region9: #{tpu_custom_call.1} parent=1 // pred_fallthru
      _
    // Predicated region
    $region10: #{tpu_custom_call.1} parent=1 // pred_check
      _
    $region11: #{tpu_custom_call.1} parent=1 // pred_check_branch
      %38 = sbr.rel (0) target = $region13
    $region12: #{tpu_custom_call.1} parent=1 // pred_region
      _
    $region13: #{tpu_custom_call.1} parent=1 // pred_fallthru
      _
    // Predicated region
    $region14: #{tpu_custom_call.1} parent=1 // pred_check
      _
    $region15: #{tpu_custom_call.1} parent=1 // pred_check_branch
      %40 = sbr.rel (0) target = $region17
    $region16: #{tpu_custom_call.1} parent=1 // pred_region
      %42 = vsyncadd [#allocation6], 0
      %s43 = sshll.u32 %s3, 4
      %s44 = int_to_ptr.hbm [resolvable:$true] %s43
      %s45 = sshll.u32 [#allocation7], 4
      %s46 = int_to_ptr.vmem [resolvable:$true] %s45
      %51 = dma.hbm_to_vmem [thread:$0]  %s44, 2048, %s46, [#allocation6], 128, 128, 8
    $region17: #{tpu_custom_call.1} parent=1 // pred_fallthru
      _
    // Predicated region
    $region18: #{tpu_custom_call.1} parent=1 // pred_check
      _
    $region19: #{tpu_custom_call.1} parent=1 // pred_check_branch
      %53 = sbr.rel (0) target = $region21
    $region20: #{tpu_custom_call.1} parent=1 // pred_region
      _
    $region21: #{tpu_custom_call.1} parent=1 // pred_fallthru
      _
    // Predicated region
    $region22: #{tpu_custom_call.1} parent=1 // pred_check
      _
    $region23: #{tpu_custom_call.1} parent=1 // pred_check_branch
      %55 = sbr.rel (0) target = $region25
    $region24: #{tpu_custom_call.1} parent=1 // pred_region
      %57 = dma.done [#allocation3], 32
    $region25: #{tpu_custom_call.1} parent=1 // pred_fallthru
      _
    // Predicated region
    $region26: #{tpu_custom_call.1} parent=1 // pred_check
      _
    $region27: #{tpu_custom_call.1} parent=1 // pred_check_branch
      %59 = sbr.rel (0) target = $region29
    $region28: #{tpu_custom_call.1} parent=1 // pred_region
      %61 = dma.done [#allocation6], 1152
    $region29: #{tpu_custom_call.1} parent=1 // pred_fallthru
      _
    // Predicated region
    $region30: #{tpu_custom_call.1} parent=1 // pred_check
      _
    $region31: #{tpu_custom_call.1} parent=1 // pred_check_branch
      %63 = sbr.rel (0) target = $region33
    $region32: #{tpu_custom_call.1} parent=1 // pred_region
      %65 = dma.done [#allocation6], 2048
    $region33: #{tpu_custom_call.1} parent=1 // pred_fallthru
      _
    %v66 = vld [vmem:[#allocation2] sm:$0x3]
    %v67 = vld [vmem:[#allocation5] sm:$0xff]
    %v68 = vld [vmem:[#allocation5 + $0x8] sm:$0xff]
    %v69 = vld [vmem:[#allocation5 + $0x10] sm:$0xff]
    %v70 = vld [vmem:[#allocation5 + $0x18] sm:$0xff]
    %v71 = vld [vmem:[#allocation5 + $0x20] sm:$0xff]
    %v72 = vld [vmem:[#allocation5 + $0x28] sm:$0xff]
    %v73 = vld [vmem:[#allocation5 + $0x30] sm:$0xff]
    %v74 = vld [vmem:[#allocation5 + $0x38] sm:$0xff]
    %v75 = vld [vmem:[#allocation5 + $0x40] sm:$0x7f]
    %v76 = vld [vmem:[%s2] sm:$0x1]
    %v78 = vperm.slane %v76, 0
    %vm80 = vcmask 580608
    %v82 = vsel %vm80, %v66, 0
    %vm84 = vcmask 1046528
    %v86 = vsel %vm84, %v75, 0
    %88 = vmatpush.msra.mxu0 0.0
    %89 = vmatpush.msra.mxu0 0.0
    %90 = vmatpush.msra.mxu0 0.0
    %91 = vmatpush.msra.mxu0 0.0
    %92 = vmatpush.msra.mxu0 0.0
    %93 = vmatpush.msra.mxu0 0.0
    %94 = vmatpush.msra.mxu0 0.0
    %95 = vmatpush.msra.mxu0 %v86
    %96 = vmatpush.msra.mxu0 %v74
    %97 = vmatpush.msra.mxu0 %v73
    %98 = vmatpush.msra.mxu0 %v72
    %99 = vmatpush.msra.mxu0 %v71
    %100 = vmatpush.msra.mxu0 %v70
    %101 = vmatpush.msra.mxu0 %v69
    %102 = vmatpush.msra.mxu0 %v68
    %103 = vmatpush.msra.mxu0 %v67
    %104 = vmatmul.f32.gmra.mxu0 %v82
    %v105 = vpop.f32.mrf.mxu0
    %v106 = vadd.f32 %v78, %v105
    %107 = vdwg.mxu0
    %v108 = vmax.f32 %v106, 0.0
    %v109 = vld [vmem:[#allocation7] sm:$0xff]
    %v110 = vld [vmem:[#allocation7 + $0x8] sm:$0xff]
    %v111 = vld [vmem:[#allocation7 + $0x10] sm:$0xff]
    %v112 = vld [vmem:[#allocation7 + $0x18] sm:$0xff]
    %v113 = vld [vmem:[#allocation7 + $0x20] sm:$0xff]
    %v114 = vld [vmem:[#allocation7 + $0x28] sm:$0xff]
    %v115 = vld [vmem:[#allocation7 + $0x30] sm:$0xff]
    %v116 = vld [vmem:[#allocation7 + $0x38] sm:$0xff]
    %v117 = vld [vmem:[#allocation7 + $0x40] sm:$0xff]
    %v118 = vld [vmem:[#allocation7 + $0x48] sm:$0xff]
    %v119 = vld [vmem:[#allocation7 + $0x50] sm:$0xff]
    %v120 = vld [vmem:[#allocation7 + $0x58] sm:$0xff]
    %v121 = vld [vmem:[#allocation7 + $0x60] sm:$0xff]
    %v122 = vld [vmem:[#allocation7 + $0x68] sm:$0xff]
    %v123 = vld [vmem:[#allocation7 + $0x70] sm:$0xff]
    %v124 = vld [vmem:[#allocation7 + $0x78] sm:$0xff]
    %v125 = vld [vmem:[%s4] sm:$0x1]
    %v127 = vperm.slane %v125, 0
    %129 = vmatpush.msra.mxu0 %v124
    %130 = vmatpush.msra.mxu0 %v123
    %131 = vmatpush.msra.mxu0 %v122
    %132 = vmatpush.msra.mxu0 %v121
    %133 = vmatpush.msra.mxu0 %v120
    %134 = vmatpush.msra.mxu0 %v119
    %135 = vmatpush.msra.mxu0 %v118
    %136 = vmatpush.msra.mxu0 %v117
    %137 = vmatpush.msra.mxu0 %v116
    %138 = vmatpush.msra.mxu0 %v115
    %139 = vmatpush.msra.mxu0 %v114
    %140 = vmatpush.msra.mxu0 %v113
    %141 = vmatpush.msra.mxu0 %v112
    %142 = vmatpush.msra.mxu0 %v111
    %143 = vmatpush.msra.mxu0 %v110
    %144 = vmatpush.msra.mxu0 %v109
    %145 = vmatmul.f32.gmra.mxu0 %v108
    %v146 = vpop.f32.mrf.mxu0
    %v147 = vadd.f32 %v127, %v146
    %148 = vdwg.mxu0
    %vm149 = vcmask 82944
    %150 = vst.msk [vmem:[#allocation8] sm:$0x3] %vm149, %v147
    // Predicated region
    $region34: #{tpu_custom_call.1} parent=1 // pred_check
      _
    $region35: #{tpu_custom_call.1} parent=1 // pred_check_branch
      %152 = sbr.rel (0) target = $region37
    $region36: #{tpu_custom_call.1} parent=1 // pred_region
      %154 = vsyncadd [#allocation4], 0
      %s156 = sshll.u32 [#allocation8], 4
      %s157 = int_to_ptr.vmem [resolvable:$true] %s156
      %s158 = sshll.u32 %s5, 4
      %s159 = int_to_ptr.hbm [resolvable:$true] %s158
      %161 = dma.vmem_to_hbm [thread:$0]  %s157, 32, %s159, [#allocation4]
    $region37: #{tpu_custom_call.1} parent=1 // pred_fallthru
      _
    // Predicated region
    $region38: #{tpu_custom_call.1} parent=1 // pred_check
      _
    $region39: #{tpu_custom_call.1} parent=1 // pred_check_branch
      %163 = sbr.rel (0) target = $region41
    $region40: #{tpu_custom_call.1} parent=1 // pred_region
      %165 = dma.done [#allocation4], 32
    $region41: #{tpu_custom_call.1} parent=1 // pred_fallthru
      _
    %166 = vsyncpa [#allocation3], 1
    %167 = vsyncpa [#allocation6], 1
    %168 = vsyncpa [#allocation4], 1

</llo_original>
